<compile_context>
chip_gen: v6e
topology: v6e:2x2x1
jax: 0.10.0
libtpu: 0.0.40
codegen_flags: <defaults>
</compile_context>

<pallas_src>
import jax
import jax.numpy as jnp
from jax.experimental import pallas as pl
from jax.experimental.pallas import tpu as pltpu

LEAKY_SLOPE = 0.2
BN_EPS = 1e-5


def _leaky(v):
    return jnp.where(v >= 0, v, LEAKY_SLOPE * v)


def _pick_batch_tile(B, cap=512):
    """Largest multiple-of-8 divisor of B (capped); full batch for tiny B."""
    if B <= 8:
        return B
    best = None
    t = 8
    while t <= min(B, cap):
        if B % t == 0:
            best = t
        t += 8
    # TODO(synk): pad B up to a multiple of 8 instead of falling back to one big block.
    return best if best is not None else B


def discriminator_forward(x, y, params, *, kernel=5, stride=2, padding=2):
    convw, convb, gamma, beta, w1, b1, w2, b2, w3, b3 = params
    f32 = jnp.float32

    B, c_in, L_in = x.shape
    assert c_in == 1
    C_out, K = convw.shape
    assert K == kernel
    L_out = (L_in + 2 * padding - kernel) // stride + 1
    F = C_out * L_out                      # channel-major flattened feature width
    H_half = w1.shape[0]
    n_classes = y.shape[1]
    n_elems = float(B * L_out)             # BN population size per channel

    # ---- glue: de-interleave padded signal into `stride` phases (no im2col copy) ----
    L_phase = L_out + (kernel - 1) // stride
    L_total = stride * L_phase
    buf_len = max(L_total, L_in + 2 * padding)
    x_sq = x.reshape(B, L_in).astype(f32)
    x_pad = jnp.pad(x_sq, ((0, 0), (padding, buf_len - L_in - padding)))[:, :L_total]
    phases = x_pad.reshape(B, L_phase, stride).transpose(2, 0, 1)   # (stride, B, L_phase)

    B_blk = _pick_batch_tile(B)
    nB = B // B_blk
    n_mom = kernel + kernel * kernel       # K first moments + K*K second moments (symmetric)

    # ------------------------------------------------------------------ call 1: stats
    def stats_kernel(phases_ref, mom_ref):
        @pl.when(pl.program_id(0) == 0)
        def _init():
            mom_ref[...] = jnp.zeros_like(mom_ref)

        ph = [phases_ref[s] for s in range(stride)]                 # (B_blk, L_phase)
        taps = [ph[k % stride][:, (k // stride):(k // stride) + L_out]
                for k in range(kernel)]                             # K x (B_blk, L_out)

        def fullsum(a):                                             # -> (1, 1)
            return jnp.sum(jnp.sum(a, axis=1, keepdims=True), axis=0, keepdims=True)

        s1 = [fullsum(t) for t in taps]                             # E-sums of taps
        s2 = {}
        for j in range(kernel):
            for k in range(j, kernel):
                s2[(j, k)] = fullsum(taps[j] * taps[k])             # tap cross moments
        cells = s1 + [s2[(min(j, k), max(j, k))]
                      for j in range(kernel) for k in range(kernel)]
        mom_ref[...] += jnp.concatenate(cells, axis=1)              # (1, n_mom)

    mom = pl.pallas_call(
        stats_kernel,
        out_shape=jax.ShapeDtypeStruct((1, n_mom), f32),
        grid=(nB,),
        in_specs=[pl.BlockSpec((stride, B_blk, L_phase), lambda b: (0, b, 0))],
        out_specs=pl.BlockSpec((1, n_mom), lambda b: (0, 0)),
        compiler_params=pltpu.CompilerParams(
            dimension_semantics=("arbitrary",),
            vmem_limit_bytes=32 * 1024 * 1024),
    )(phases)

    # ---- glue: fold BN batch stats + conv bias into per-channel scale/shift (O(C*K^2)) ----
    convw_f = convw.astype(f32)
    m1 = mom[0, :kernel] / n_elems                                  # (K,)  E[tap_k]
    m2 = mom[0, kernel:].reshape(kernel, kernel) / n_elems          # (K,K) E[tap_j*tap_k]
    e_r = convw_f @ m1                                              # (C,)  E[conv_c] - bias_c
    e_r2 = jnp.einsum('cj,jk,ck->c', convw_f, m2, convw_f)          # (C,)  E[(conv_c - bias_c)^2]
    var = e_r2 - e_r * e_r
    inv_sd = jax.lax.rsqrt(var + BN_EPS)
    scale = gamma.astype(f32) * inv_sd                              # (C,)
    shift = beta.astype(f32) - scale * e_r                          # (C,)  bias folded in
    # lane vectors in channel-major flattened layout (matches torch .view(B, -1))
    wvec = jnp.repeat((convw_f * scale[:, None]).T, L_out, axis=1)  # (K, F)
    shiftvec = jnp.repeat(shift, L_out)[None, :]                    # (1, F)

    # ---- glue: weight layout prep ----
    w1flat = jnp.transpose(w1).astype(f32)                          # (F, H_half)
    w2rows = jnp.transpose(w2).astype(f32)                          # (n_classes, H_half)
    w3x = w3[:, :H_half].astype(f32)                                # (1, H_half)
    w3y = w3[:, H_half:].astype(f32)                                # (1, H_half)
    b1r = b1.reshape(1, H_half).astype(f32)
    b2r = b2.reshape(1, H_half).astype(f32)
    b3r = b3.reshape(1, 1).astype(f32)

    # ------------------------------------------------------------------ call 2: main pass
    def main_kernel(phases_ref, y_ref, wvec_ref, shift_ref, w1_ref, b1_ref,
                    w2_ref, b2_ref, w3x_ref, w3y_ref, b3_ref, out_ref):
        ph = [phases_ref[s] for s in range(stride)]                 # (B_blk, L_phase)

        # fused Conv1d + BatchNorm, built lane-dense as (B_blk, C_out*L_out)
        acc = None
        for k in range(kernel):
            tap = ph[k % stride][:, (k // stride):(k // stride) + L_out]   # (B_blk, L_out)
            tap_cat = jnp.concatenate([tap] * C_out, axis=1)               # (B_blk, F)
            term = tap_cat * wvec_ref[k:k + 1, :]                          # BN scale folded in
            acc = term if acc is None else acc + term
        act = _leaky(acc + shift_ref[...])                          # conv bias + BN shift folded

        # lin_dis_curve: one fused K=F MXU contraction (channel concat folded into W1)
        x_out = _leaky(jnp.dot(act, w1_ref[...],
                               preferred_element_type=jnp.float32) + b1_ref[...])

        # lin_dis_class on the VPU (one-hot y, tiny n_classes -> MXU would be wasted)
        y_acc = y_ref[:, 0:1] * w2_ref[0:1, :]
        for c in range(1, n_classes):
            y_acc = y_acc + y_ref[:, c:c + 1] * w2_ref[c:c + 1, :]
        y_out = _leaky(y_acc + b2_ref[...])

        # [x_out, y_out] concat folded into the final N=1 projection (VPU + lane reduce)
        logit = (jnp.sum(x_out * w3x_ref[...], axis=-1, keepdims=True)
                 + jnp.sum(y_out * w3y_ref[...], axis=-1, keepdims=True)
                 + b3_ref[...])
        out_ref[...] = jax.nn.sigmoid(logit)

    out = pl.pallas_call(
        main_kernel,
        out_shape=jax.ShapeDtypeStruct((B, 1), f32),
        grid=(nB,),
        in_specs=[
            pl.BlockSpec((stride, B_blk, L_phase), lambda b: (0, b, 0)),   # phases
            pl.BlockSpec((B_blk, n_classes), lambda b: (b, 0)),            # y one-hot
            pl.BlockSpec((kernel, F), lambda b: (0, 0)),                   # scaled conv taps
            pl.BlockSpec((1, F), lambda b: (0, 0)),                        # fused bias/shift
            pl.BlockSpec((F, H_half), lambda b: (0, 0)),                   # W1 (flattened)
            pl.BlockSpec((1, H_half), lambda b: (0, 0)),                   # b1
            pl.BlockSpec((n_classes, H_half), lambda b: (0, 0)),           # W2^T rows
            pl.BlockSpec((1, H_half), lambda b: (0, 0)),                   # b2
            pl.BlockSpec((1, H_half), lambda b: (0, 0)),                   # W3 (x half)
            pl.BlockSpec((1, H_half), lambda b: (0, 0)),                   # W3 (y half)
            pl.BlockSpec((1, 1), lambda b: (0, 0)),                        # b3
        ],
        out_specs=pl.BlockSpec((B_blk, 1), lambda b: (b, 0)),
        compiler_params=pltpu.CompilerParams(
            dimension_semantics=("parallel",),
            vmem_limit_bytes=32 * 1024 * 1024),
    )(phases, y.astype(f32), wvec, shiftvec, w1flat, b1r, w2rows, b2r, w3x, w3y, b3r)

    return out


def discriminator_reference(x, y, params, *, kernel=5, stride=2, padding=2):
    """Pure-JAX reference mirroring the PyTorch forward semantics."""
    convw, convb, gamma, beta, w1, b1, w2, b2, w3, b3 = params
    B, _, L_in = x.shape
    L_out = (L_in + 2 * padding - kernel) // stride + 1
    x_pad = jnp.pad(x.reshape(B, L_in), ((0, 0), (padding, padding)))
    patches = jnp.stack(
        [x_pad[:, k: k + stride * (L_out - 1) + 1: stride] for k in range(kernel)],
        axis=0)
    conv = jnp.einsum('kbl,ck->bcl', patches, convw) + convb[None, :, None]
    mu = conv.mean(axis=(0, 2), keepdims=True)
    var = ((conv - mu) ** 2).mean(axis=(0, 2), keepdims=True)
    bn = (conv - mu) / jnp.sqrt(var + BN_EPS) * gamma[None, :, None] + beta[None, :, None]
    act = _leaky(bn)
    flat = act.reshape(B, -1)
    x_out = _leaky(flat @ w1.T + b1)
    y_out = _leaky(y @ w2.T + b2)
    lin_in = jnp.concatenate([x_out, y_out], axis=-1)
    return 1.0 / (1.0 + jnp.exp(-(lin_in @ w3.T + b3)))


if __name__ == "__main__":
    # small shapes consistent with the module (default input_shape=800 shrunk to 64)
    B = 2
    n_classes = 2
    input_shape = 64
    cv_channels = [1, 4]
    K, stride, padding = 5, 2, 2
    lin_num_neurons = [32]
    H_half = lin_num_neurons[0] // 2
    L_out = (input_shape + 2 * padding - K) // stride + 1
    lin_input_neurons = cv_channels[1] * L_out            # 4 * 32 = 128

    key = jax.random.PRNGKey(0)
    kx, ky, kp = jax.random.split(key, 3)
    x = jax.random.normal(kx, (B, 1, input_shape), jnp.float32)
    labels = jax.random.randint(ky, (B,), 0, n_classes)
    y = jax.nn.one_hot(labels, n_classes, dtype=jnp.float32)

    def uinit(k, shape, fan_in):
        bound = 1.0 / (fan_in ** 0.5)
        return jax.random.uniform(k, shape, jnp.float32, -bound, bound)

    ks = jax.random.split(kp, 8)
    convw = uinit(ks[0], (cv_channels[1], K), cv_channels[0] * K)       # Conv1d weight (C_in=1 squeezed)
    convb = uinit(ks[1], (cv_channels[1],), cv_channels[0] * K)         # Conv1d bias
    gamma = jnp.ones((cv_channels[1],), jnp.float32)                    # BN weight (PyTorch default init)
    beta = jnp.zeros((cv_channels[1],), jnp.float32)                    # BN bias
    w1 = uinit(ks[2], (H_half, lin_input_neurons), lin_input_neurons)   # lin_dis_curve
    b1 = uinit(ks[3], (H_half,), lin_input_neurons)
    w2 = uinit(ks[4], (H_half, n_classes), n_classes)                   # lin_dis_class
    b2 = uinit(ks[5], (H_half,), n_classes)
    w3 = uinit(ks[6], (1, lin_num_neurons[-1]), lin_num_neurons[-1])    # lin_dis
    b3 = uinit(ks[7], (1,), lin_num_neurons[-1])
    params = (convw, convb, gamma, beta, w1, b1, w2, b2, w3, b3)

    out = discriminator_forward(x, y, params, kernel=K, stride=stride, padding=padding)
    out = jax.block_until_ready(out)
    ref = discriminator_reference(x, y, params, kernel=K, stride=stride, padding=padding)

    assert out.shape == (B, 1), out.shape
    assert jnp.allclose(out, ref, atol=1e-3, rtol=1e-3), (out, ref)
    print("KERNEL_OK")
</pallas_src>

<mosaic_0001>
module attributes {stable_mosaic.version = 11 : i64} {
  func.func @stats_kernel(%arg0: i32, %arg1: memref<2x2x34xf32, #tpu.memory_space<vmem>>, %arg2: memref<1x30xf32, #tpu.memory_space<vmem>>) attributes {dimension_semantics = [#tpu.dimension_semantics<arbitrary>], iteration_bounds = array<i64: 1>, scalar_prefetch = 0 : i64, scratch_operands = 0 : i64, tpu.core_type = #tpu.core_type<tc>, window_params = [{transform_indices = @transform_0, window_bounds = array<i64: 2, 2, 34>}, {pipeline_mode = #tpu.pipeline_mode<synchronous>, transform_indices = @transform_1, window_bounds = array<i64: 1, 30>}]} {
    %c0_i32 = arith.constant 0 : i32
    %0 = arith.cmpi eq, %arg0, %c0_i32 : i32
    %1 = arith.extui %0 : i1 to i32
    %c0_i32_0 = arith.constant 0 : i32
    %2 = arith.cmpi ne, %1, %c0_i32_0 : i32
    scf.if %2 {
      %cst_48 = arith.constant 0.000000e+00 : f32
      %113 = vector.broadcast %cst_48 : f32 to vector<1x30xf32>
      %c0_49 = arith.constant 0 : index
      %c0_50 = arith.constant 0 : index
      %114 = vector.load %arg2[%c0_49, %c0_50] : memref<1x30xf32, #tpu.memory_space<vmem>>, vector<1x30xf32>
      tpu.vector_store %arg2[%c0_49, %c0_50], %113 {strides = array<i32>} : memref<1x30xf32, #tpu.memory_space<vmem>>, vector<1x30xf32>,
    } else {
    }
    %c0 = arith.constant 0 : index
    %c0_1 = arith.constant 0 : index
    %c0_2 = arith.constant 0 : index
    %3 = vector.load %arg1[%c0, %c0_1, %c0_2] : memref<2x2x34xf32, #tpu.memory_space<vmem>>, vector<1x2x34xf32>
    %4 = vector.shape_cast %3 : vector<1x2x34xf32> to vector<2x34xf32>
    %c1 = arith.constant 1 : index
    %c0_3 = arith.constant 0 : index
    %c0_4 = arith.constant 0 : index
    %5 = vector.load %arg1[%c1, %c0_3, %c0_4] : memref<2x2x34xf32, #tpu.memory_space<vmem>>, vector<1x2x34xf32>
    %6 = vector.shape_cast %5 : vector<1x2x34xf32> to vector<2x34xf32>
    %7 = vector.extract_strided_slice %4 {offsets = [0, 0], sizes = [2, 32], strides = [1, 1]} : vector<2x34xf32> to vector<2x32xf32>
    %8 = vector.extract_strided_slice %6 {offsets = [0, 0], sizes = [2, 32], strides = [1, 1]} : vector<2x34xf32> to vector<2x32xf32>
    %9 = vector.extract_strided_slice %4 {offsets = [0, 1], sizes = [2, 32], strides = [1, 1]} : vector<2x34xf32> to vector<2x32xf32>
    %10 = vector.extract_strided_slice %6 {offsets = [0, 1], sizes = [2, 32], strides = [1, 1]} : vector<2x34xf32> to vector<2x32xf32>
    %11 = vector.extract_strided_slice %4 {offsets = [0, 2], sizes = [2, 32], strides = [1, 1]} : vector<2x34xf32> to vector<2x32xf32>
    %cst = arith.constant dense<0.000000e+00> : vector<2xf32>
    %12 = vector.multi_reduction <add>, %7, %cst [1] : vector<2x32xf32> to vector<2xf32>
    %13 = vector.shape_cast %12 : vector<2xf32> to vector<2x1xf32>
    %cst_5 = arith.constant dense<0.000000e+00> : vector<1xf32>
    %14 = vector.multi_reduction <add>, %13, %cst_5 [0] : vector<2x1xf32> to vector<1xf32>
    %15 = vector.shape_cast %14 : vector<1xf32> to vector<1x1xf32>
    %cst_6 = arith.constant dense<0.000000e+00> : vector<2xf32>
    %16 = vector.multi_reduction <add>, %8, %cst_6 [1] : vector<2x32xf32> to vector<2xf32>
    %17 = vector.shape_cast %16 : vector<2xf32> to vector<2x1xf32>
    %cst_7 = arith.constant dense<0.000000e+00> : vector<1xf32>
    %18 = vector.multi_reduction <add>, %17, %cst_7 [0] : vector<2x1xf32> to vector<1xf32>
    %19 = vector.shape_cast %18 : vector<1xf32> to vector<1x1xf32>
    %cst_8 = arith.constant dense<0.000000e+00> : vector<2xf32>
    %20 = vector.multi_reduction <add>, %9, %cst_8 [1] : vector<2x32xf32> to vector<2xf32>
    %21 = vector.shape_cast %20 : vector<2xf32> to vector<2x1xf32>
    %cst_9 = arith.constant dense<0.000000e+00> : vector<1xf32>
    %22 = vector.multi_reduction <add>, %21, %cst_9 [0] : vector<2x1xf32> to vector<1xf32>
    %23 = vector.shape_cast %22 : vector<1xf32> to vector<1x1xf32>
    %cst_10 = arith.constant dense<0.000000e+00> : vector<2xf32>
    %24 = vector.multi_reduction <add>, %10, %cst_10 [1] : vector<2x32xf32> to vector<2xf32>
    %25 = vector.shape_cast %24 : vector<2xf32> to vector<2x1xf32>
    %cst_11 = arith.constant dense<0.000000e+00> : vector<1xf32>
    %26 = vector.multi_reduction <add>, %25, %cst_11 [0] : vector<2x1xf32> to vector<1xf32>
    %27 = vector.shape_cast %26 : vector<1xf32> to vector<1x1xf32>
    %cst_12 = arith.constant dense<0.000000e+00> : vector<2xf32>
    %28 = vector.multi_reduction <add>, %11, %cst_12 [1] : vector<2x32xf32> to vector<2xf32>
    %29 = vector.shape_cast %28 : vector<2xf32> to vector<2x1xf32>
    %cst_13 = arith.constant dense<0.000000e+00> : vector<1xf32>
    %30 = vector.multi_reduction <add>, %29, %cst_13 [0] : vector<2x1xf32> to vector<1xf32>
    %31 = vector.shape_cast %30 : vector<1xf32> to vector<1x1xf32>
    %32 = arith.mulf %7, %7 : vector<2x32xf32>
    %cst_14 = arith.constant dense<0.000000e+00> : vector<2xf32>
    %33 = vector.multi_reduction <add>, %32, %cst_14 [1] : vector<2x32xf32> to vector<2xf32>
    %34 = vector.shape_cast %33 : vector<2xf32> to vector<2x1xf32>
    %cst_15 = arith.constant dense<0.000000e+00> : vector<1xf32>
    %35 = vector.multi_reduction <add>, %34, %cst_15 [0] : vector<2x1xf32> to vector<1xf32>
    %36 = vector.shape_cast %35 : vector<1xf32> to vector<1x1xf32>
    %37 = arith.mulf %7, %8 : vector<2x32xf32>
    %cst_16 = arith.constant dense<0.000000e+00> : vector<2xf32>
    %38 = vector.multi_reduction <add>, %37, %cst_16 [1] : vector<2x32xf32> to vector<2xf32>
    %39 = vector.shape_cast %38 : vector<2xf32> to vector<2x1xf32>
    %cst_17 = arith.constant dense<0.000000e+00> : vector<1xf32>
    %40 = vector.multi_reduction <add>, %39, %cst_17 [0] : vector<2x1xf32> to vector<1xf32>
    %41 = vector.shape_cast %40 : vector<1xf32> to vector<1x1xf32>
    %42 = arith.mulf %7, %9 : vector<2x32xf32>
    %cst_18 = arith.constant dense<0.000000e+00> : vector<2xf32>
    %43 = vector.multi_reduction <add>, %42, %cst_18 [1] : vector<2x32xf32> to vector<2xf32>
    %44 = vector.shape_cast %43 : vector<2xf32> to vector<2x1xf32>
    %cst_19 = arith.constant dense<0.000000e+00> : vector<1xf32>
    %45 = vector.multi_reduction <add>, %44, %cst_19 [0] : vector<2x1xf32> to vector<1xf32>
    %46 = vector.shape_cast %45 : vector<1xf32> to vector<1x1xf32>
    %47 = arith.mulf %7, %10 : vector<2x32xf32>
    %cst_20 = arith.constant dense<0.000000e+00> : vector<2xf32>
    %48 = vector.multi_reduction <add>, %47, %cst_20 [1] : vector<2x32xf32> to vector<2xf32>
    %49 = vector.shape_cast %48 : vector<2xf32> to vector<2x1xf32>
    %cst_21 = arith.constant dense<0.000000e+00> : vector<1xf32>
    %50 = vector.multi_reduction <add>, %49, %cst_21 [0] : vector<2x1xf32> to vector<1xf32>
    %51 = vector.shape_cast %50 : vector<1xf32> to vector<1x1xf32>
    %52 = arith.mulf %7, %11 : vector<2x32xf32>
    %cst_22 = arith.constant dense<0.000000e+00> : vector<2xf32>
    %53 = vector.multi_reduction <add>, %52, %cst_22 [1] : vector<2x32xf32> to vector<2xf32>
    %54 = vector.shape_cast %53 : vector<2xf32> to vector<2x1xf32>
    %cst_23 = arith.constant dense<0.000000e+00> : vector<1xf32>
    %55 = vector.multi_reduction <add>, %54, %cst_23 [0] : vector<2x1xf32> to vector<1xf32>
    %56 = vector.shape_cast %55 : vector<1xf32> to vector<1x1xf32>
    %57 = arith.mulf %8, %8 : vector<2x32xf32>
    %cst_24 = arith.constant dense<0.000000e+00> : vector<2xf32>
    %58 = vector.multi_reduction <add>, %57, %cst_24 [1] : vector<2x32xf32> to vector<2xf32>
    %59 = vector.shape_cast %58 : vector<2xf32> to vector<2x1xf32>
    %cst_25 = arith.constant dense<0.000000e+00> : vector<1xf32>
    %60 = vector.multi_reduction <add>, %59, %cst_25 [0] : vector<2x1xf32> to vector<1xf32>
    %61 = vector.shape_cast %60 : vector<1xf32> to vector<1x1xf32>
    %62 = arith.mulf %8, %9 : vector<2x32xf32>
    %cst_26 = arith.constant dense<0.000000e+00> : vector<2xf32>
    %63 = vector.multi_reduction <add>, %62, %cst_26 [1] : vector<2x32xf32> to vector<2xf32>
    %64 = vector.shape_cast %63 : vector<2xf32> to vector<2x1xf32>
    %cst_27 = arith.constant dense<0.000000e+00> : vector<1xf32>
    %65 = vector.multi_reduction <add>, %64, %cst_27 [0] : vector<2x1xf32> to vector<1xf32>
    %66 = vector.shape_cast %65 : vector<1xf32> to vector<1x1xf32>
    %67 = arith.mulf %8, %10 : vector<2x32xf32>
    %cst_28 = arith.constant dense<0.000000e+00> : vector<2xf32>
    %68 = vector.multi_reduction <add>, %67, %cst_28 [1] : vector<2x32xf32> to vector<2xf32>
    %69 = vector.shape_cast %68 : vector<2xf32> to vector<2x1xf32>
    %cst_29 = arith.constant dense<0.000000e+00> : vector<1xf32>
    %70 = vector.multi_reduction <add>, %69, %cst_29 [0] : vector<2x1xf32> to vector<1xf32>
    %71 = vector.shape_cast %70 : vector<1xf32> to vector<1x1xf32>
    %72 = arith.mulf %8, %11 : vector<2x32xf32>
    %cst_30 = arith.constant dense<0.000000e+00> : vector<2xf32>
    %73 = vector.multi_reduction <add>, %72, %cst_30 [1] : vector<2x32xf32> to vector<2xf32>
    %74 = vector.shape_cast %73 : vector<2xf32> to vector<2x1xf32>
    %cst_31 = arith.constant dense<0.000000e+00> : vector<1xf32>
    %75 = vector.multi_reduction <add>, %74, %cst_31 [0] : vector<2x1xf32> to vector<1xf32>
    %76 = vector.shape_cast %75 : vector<1xf32> to vector<1x1xf32>
    %77 = arith.mulf %9, %9 : vector<2x32xf32>
    %cst_32 = arith.constant dense<0.000000e+00> : vector<2xf32>
    %78 = vector.multi_reduction <add>, %77, %cst_32 [1] : vector<2x32xf32> to vector<2xf32>
    %79 = vector.shape_cast %78 : vector<2xf32> to vector<2x1xf32>
    %cst_33 = arith.constant dense<0.000000e+00> : vector<1xf32>
    %80 = vector.multi_reduction <add>, %79, %cst_33 [0] : vector<2x1xf32> to vector<1xf32>
    %81 = vector.shape_cast %80 : vector<1xf32> to vector<1x1xf32>
    %82 = arith.mulf %9, %10 : vector<2x32xf32>
    %cst_34 = arith.constant dense<0.000000e+00> : vector<2xf32>
    %83 = vector.multi_reduction <add>, %82, %cst_34 [1] : vector<2x32xf32> to vector<2xf32>
    %84 = vector.shape_cast %83 : vector<2xf32> to vector<2x1xf32>
    %cst_35 = arith.constant dense<0.000000e+00> : vector<1xf32>
    %85 = vector.multi_reduction <add>, %84, %cst_35 [0] : vector<2x1xf32> to vector<1xf32>
    %86 = vector.shape_cast %85 : vector<1xf32> to vector<1x1xf32>
    %87 = arith.mulf %9, %11 : vector<2x32xf32>
    %cst_36 = arith.constant dense<0.000000e+00> : vector<2xf32>
    %88 = vector.multi_reduction <add>, %87, %cst_36 [1] : vector<2x32xf32> to vector<2xf32>
    %89 = vector.shape_cast %88 : vector<2xf32> to vector<2x1xf32>
    %cst_37 = arith.constant dense<0.000000e+00> : vector<1xf32>
    %90 = vector.multi_reduction <add>, %89, %cst_37 [0] : vector<2x1xf32> to vector<1xf32>
    %91 = vector.shape_cast %90 : vector<1xf32> to vector<1x1xf32>
    %92 = arith.mulf %10, %10 : vector<2x32xf32>
    %cst_38 = arith.constant dense<0.000000e+00> : vector<2xf32>
    %93 = vector.multi_reduction <add>, %92, %cst_38 [1] : vector<2x32xf32> to vector<2xf32>
    %94 = vector.shape_cast %93 : vector<2xf32> to vector<2x1xf32>
    %cst_39 = arith.constant dense<0.000000e+00> : vector<1xf32>
    %95 = vector.multi_reduction <add>, %94, %cst_39 [0] : vector<2x1xf32> to vector<1xf32>
    %96 = vector.shape_cast %95 : vector<1xf32> to vector<1x1xf32>
    %97 = arith.mulf %10, %11 : vector<2x32xf32>
    %cst_40 = arith.constant dense<0.000000e+00> : vector<2xf32>
    %98 = vector.multi_reduction <add>, %97, %cst_40 [1] : vector<2x32xf32> to vector<2xf32>
    %99 = vector.shape_cast %98 : vector<2xf32> to vector<2x1xf32>
    %cst_41 = arith.constant dense<0.000000e+00> : vector<1xf32>
    %100 = vector.multi_reduction <add>, %99, %cst_41 [0] : vector<2x1xf32> to vector<1xf32>
    %101 = vector.shape_cast %100 : vector<1xf32> to vector<1x1xf32>
    %102 = arith.mulf %11, %11 : vector<2x32xf32>
    %cst_42 = arith.constant dense<0.000000e+00> : vector<2xf32>
    %103 = vector.multi_reduction <add>, %102, %cst_42 [1] : vector<2x32xf32> to vector<2xf32>
    %104 = vector.shape_cast %103 : vector<2xf32> to vector<2x1xf32>
    %cst_43 = arith.constant dense<0.000000e+00> : vector<1xf32>
    %105 = vector.multi_reduction <add>, %104, %cst_43 [0] : vector<2x1xf32> to vector<1xf32>
    %106 = vector.shape_cast %105 : vector<1xf32> to vector<1x1xf32>
    %c0_44 = arith.constant 0 : index
    %c0_45 = arith.constant 0 : index
    %107 = vector.load %arg2[%c0_44, %c0_45] : memref<1x30xf32, #tpu.memory_space<vmem>>, vector<1x30xf32>
    %108 = tpu.concatenate %15, %19, %23, %27, %31, %36, %41, %46, %51, %56, %41, %61, %66, %71, %76, %46 in 1 : vector<1x1xf32>, vector<1x1xf32>, vector<1x1xf32>, vector<1x1xf32>, vector<1x1xf32>, vector<1x1xf32>, vector<1x1xf32>, vector<1x1xf32>, vector<1x1xf32>, vector<1x1xf32>, vector<1x1xf32>, vector<1x1xf32>, vector<1x1xf32>, vector<1x1xf32>, vector<1x1xf32>, vector<1x1xf32> -> vector<1x16xf32>
    %109 = tpu.concatenate %66, %81, %86, %91, %51, %71, %86, %96, %101, %56, %76, %91, %101, %106 in 1 : vector<1x1xf32>, vector<1x1xf32>, vector<1x1xf32>, vector<1x1xf32>, vector<1x1xf32>, vector<1x1xf32>, vector<1x1xf32>, vector<1x1xf32>, vector<1x1xf32>, vector<1x1xf32>, vector<1x1xf32>, vector<1x1xf32>, vector<1x1xf32>, vector<1x1xf32> -> vector<1x14xf32>
    %110 = tpu.concatenate %108, %109 in 1 : vector<1x16xf32>, vector<1x14xf32> -> vector<1x30xf32>
    %111 = arith.addf %107, %110 : vector<1x30xf32>
    %c0_46 = arith.constant 0 : index
    %c0_47 = arith.constant 0 : index
    %112 = vector.load %arg2[%c0_46, %c0_47] : memref<1x30xf32, #tpu.memory_space<vmem>>, vector<1x30xf32>
    tpu.vector_store %arg2[%c0_46, %c0_47], %111 {strides = array<i32>} : memref<1x30xf32, #tpu.memory_space<vmem>>, vector<1x30xf32>,
    return
  }
  func.func @transform_0(%arg0: i32) -> (i32, i32, i32) {
    %c0_i32 = arith.constant 0 : i32
    %c0_i32_0 = arith.constant 0 : i32
    %c0_i32_1 = arith.constant 0 : i32
    return %c0_i32, %arg0, %c0_i32_0 : i32, i32, i32
  }
  func.func @transform_1(%arg0: i32) -> (i32, i32) {
    %c0_i32 = arith.constant 0 : i32
    %c0_i32_0 = arith.constant 0 : i32
    %c0_i32_1 = arith.constant 0 : i32
    return %c0_i32, %c0_i32_0 : i32, i32
  }
}

</mosaic_0001>

<llo_original>
// kernel: tpu_custom_call.1
$region0: #{tpu_custom_call.1}
  #allocation0 [shape = 'u32[]', space=smem, size = 0x4, offset = 0x4, fixed_abs, tag = 'smem constant byte address 0x4 - core index']
  #allocation1 [shape = 'u32[144,128]{1,0:T(1,128)}', space=vmem, size = 0x12000, scoped, tag = 'internal scratch']
  %s0 = inlined_call_operand.hbm [shape: f32[2,2,34], index: 0, kind: input, shape index: {}]
  %s1 = inlined_call_operand.hbm [shape: f32[1,30], index: 1, kind: output, shape index: {}]
  %s2 = sld [smem:[#allocation0]]
  $region22: #{tpu_custom_call.1} parent=0
    _
  %s4 = ssub.s32 1, %s2
  %s5 = scalar_select 0, %s4, %s2
  $region1: #{tpu_custom_call.1} parent=0
    #allocation2 [shape = 'u8[2048]{0}', space=vmem, size = 0x800, scoped, tag = 'input window, operand 0, single buffered']
    #allocation3 [shape = 's32[1]{0}', space=sflag, size = 0x4, scoped, tag = 'scoped memory for tpu_custom_call.1']
    #allocation4 [shape = 's32[1]{0}', space=sflag, size = 0x4, scoped, tag = 'scoped memory for tpu_custom_call.1']
    #allocation5 [shape = 'u8[512]{0}', space=vmem, size = 0x400, scoped, tag = 'output window, operand 0, single buffered']
    %6 = vsyncpa [#allocation3], 0
    %7 = vsyncpa [#allocation4], 0
    // Predicated region
    $region2: #{tpu_custom_call.1} parent=1 // pred_check
      _
    $region3: #{tpu_custom_call.1} parent=1 // pred_check_branch
      %9 = sbr.rel (0) target = $region5
    $region4: #{tpu_custom_call.1} parent=1 // pred_region
      %s11 = ssub.s32 64, 64
      %12 = vsyncadd [#allocation3], %s11
      %s13 = sshll.u32 [#allocation2], 4
      %s14 = int_to_ptr.vmem [resolvable:$true] %s13
      %19 = dma.hbm_to_vmem [thread:$0]  %s0, 64, %s14, [#allocation3], 32, 32, 2
    $region5: #{tpu_custom_call.1} parent=1 // pred_fallthru
      _
    // Predicated region
    $region6: #{tpu_custom_call.1} parent=1 // pred_check
      _
    $region7: #{tpu_custom_call.1} parent=1 // pred_check_branch
      %21 = sbr.rel (0) target = $region9
    $region8: #{tpu_custom_call.1} parent=1 // pred_region
      %22 = dma.done [#allocation3], 64
    $region9: #{tpu_custom_call.1} parent=1 // pred_fallthru
      _
    %p23 = scmp.eq.s32.totalorder 0, 0
    // Predicated region
    $region10: #{tpu_custom_call.1} parent=1 // pred_check
      %p24 = pneg %p23
    $region11: #{tpu_custom_call.1} parent=1 // pred_check_branch
      %26 = sbr.rel (%p24) target = $region13
    $region12: #{tpu_custom_call.1} parent=1 // pred_region
      %vm27 = vcmask 237568
      %28 = vst.msk [vmem:[#allocation5] sm:$0x1] %vm27, 0.0
    $region13: #{tpu_custom_call.1} parent=1 // pred_fallthru
      _
    %v29 = vld [vmem:[#allocation2] sm:$0x3]
    %s30 = scalar_lea.vmem [#allocation2], 2
    %v31 = vld [vmem:[%s30] sm:$0x3]
    %vm32 = vcmask 254976
    %v33 = vsel %vm32, %v29, 0.0
    %34 = vadd.xlane.f32.xlu0 %v33
    %v35 = vpop.xlane.xlu0 %34
    %vm36 = vcmask 1041408
    %v37 = vsel %vm36, %v35, 0.0
    %v38 = vrot.slane %v37, 4
    %v39 = vadd.f32 %v37, %v38
    %v40 = vrot.slane %v39, 2
    %v41 = vadd.f32 %v39, %v40
    %v42 = vrot.slane %v41, 1
    %v43 = vadd.f32 %v41, %v42
    %v44 = vsel %vm32, %v31, 0.0
    %45 = vadd.xlane.f32.xlu0 %v44
    %v46 = vpop.xlane.xlu0 %45
    %v47 = vsel %vm36, %v46, 0.0
    %v48 = vrot.slane %v47, 4
    %v49 = vadd.f32 %v47, %v48
    %v50 = vrot.slane %v49, 2
    %v51 = vadd.f32 %v49, %v50
    %v52 = vrot.slane %v51, 1
    %v53 = vadd.f32 %v51, %v52
    %55 = vrot.lane.b32.xlu0 %v29, 127
    %v56 = vpop.permute.xlu0 %55
    %v58 = vsel %vm32, %v56, 0.0
    %59 = vadd.xlane.f32.xlu0 %v58
    %v60 = vpop.xlane.xlu0 %59
    %v61 = vsel %vm36, %v60, 0.0
    %v62 = vrot.slane %v61, 4
    %v63 = vadd.f32 %v61, %v62
    %v64 = vrot.slane %v63, 2
    %v65 = vadd.f32 %v63, %v64
    %v66 = vrot.slane %v65, 1
    %v67 = vadd.f32 %v65, %v66
    %69 = vrot.lane.b32.xlu0 %v31, 127
    %v70 = vpop.permute.xlu0 %69
    %v72 = vsel %vm32, %v70, 0.0
    %73 = vadd.xlane.f32.xlu0 %v72
    %v74 = vpop.xlane.xlu0 %73
    %v75 = vsel %vm36, %v74, 0.0
    %v76 = vrot.slane %v75, 4
    %v77 = vadd.f32 %v75, %v76
    %v78 = vrot.slane %v77, 2
    %v79 = vadd.f32 %v77, %v78
    %v80 = vrot.slane %v79, 1
    %v81 = vadd.f32 %v79, %v80
    %82 = vrot.lane.b32.xlu0 %v29, 126
    %v83 = vpop.permute.xlu0 %82
    %v85 = vsel %vm32, %v83, 0.0
    %86 = vadd.xlane.f32.xlu0 %v85
    %v87 = vpop.xlane.xlu0 %86
    %v88 = vsel %vm36, %v87, 0.0
    %v89 = vrot.slane %v88, 4
    %v90 = vadd.f32 %v88, %v89
    %v91 = vrot.slane %v90, 2
    %v92 = vadd.f32 %v90, %v91
    %v93 = vrot.slane %v92, 1
    %v94 = vadd.f32 %v92, %v93
    %v95 = vmul.f32 %v29, %v29
    %v96 = vsel %vm32, %v95, 0.0
    %97 = vadd.xlane.f32.xlu0 %v96
    %v98 = vpop.xlane.xlu0 %97
    %v99 = vsel %vm36, %v98, 0.0
    %v100 = vrot.slane %v99, 4
    %v101 = vadd.f32 %v99, %v100
    %v102 = vrot.slane %v101, 2
    %v103 = vadd.f32 %v101, %v102
    %v104 = vrot.slane %v103, 1
    %v105 = vadd.f32 %v103, %v104
    %v106 = vmul.f32 %v29, %v31
    %v107 = vsel %vm32, %v106, 0.0
    %108 = vadd.xlane.f32.xlu0 %v107
    %v109 = vpop.xlane.xlu0 %108
    %v110 = vsel %vm36, %v109, 0.0
    %v111 = vrot.slane %v110, 4
    %v112 = vadd.f32 %v110, %v111
    %v113 = vrot.slane %v112, 2
    %v114 = vadd.f32 %v112, %v113
    %v115 = vrot.slane %v114, 1
    %v116 = vadd.f32 %v114, %v115
    %v117 = vmul.f32 %v29, %v56
    %v118 = vsel %vm32, %v117, 0.0
    %119 = vadd.xlane.f32.xlu0 %v118
    %v120 = vpop.xlane.xlu0 %119
    %v121 = vsel %vm36, %v120, 0.0
    %v122 = vrot.slane %v121, 4
    %v123 = vadd.f32 %v121, %v122
    %v124 = vrot.slane %v123, 2
    %v125 = vadd.f32 %v123, %v124
    %v126 = vrot.slane %v125, 1
    %v127 = vadd.f32 %v125, %v126
    %v128 = vmul.f32 %v29, %v70
    %v129 = vsel %vm32, %v128, 0.0
    %130 = vadd.xlane.f32.xlu0 %v129
    %v131 = vpop.xlane.xlu0 %130
    %v132 = vsel %vm36, %v131, 0.0
    %v133 = vrot.slane %v132, 4
    %v134 = vadd.f32 %v132, %v133
    %v135 = vrot.slane %v134, 2
    %v136 = vadd.f32 %v134, %v135
    %v137 = vrot.slane %v136, 1
    %v138 = vadd.f32 %v136, %v137
    %v139 = vmul.f32 %v29, %v83
    %v140 = vsel %vm32, %v139, 0.0
    %141 = vadd.xlane.f32.xlu0 %v140
    %v142 = vpop.xlane.xlu0 %141
    %v143 = vsel %vm36, %v142, 0.0
    %v144 = vrot.slane %v143, 4
    %v145 = vadd.f32 %v143, %v144
    %v146 = vrot.slane %v145, 2
    %v147 = vadd.f32 %v145, %v146
    %v148 = vrot.slane %v147, 1
    %v149 = vadd.f32 %v147, %v148
    %v150 = vmul.f32 %v31, %v31
    %v151 = vsel %vm32, %v150, 0.0
    %152 = vadd.xlane.f32.xlu0 %v151
    %v153 = vpop.xlane.xlu0 %152
    %v154 = vsel %vm36, %v153, 0.0
    %v155 = vrot.slane %v154, 4
    %v156 = vadd.f32 %v154, %v155
    %v157 = vrot.slane %v156, 2
    %v158 = vadd.f32 %v156, %v157
    %v159 = vrot.slane %v158, 1
    %v160 = vadd.f32 %v158, %v159
    %v161 = vmul.f32 %v31, %v56
    %v162 = vsel %vm32, %v161, 0.0
    %163 = vadd.xlane.f32.xlu0 %v162
    %v164 = vpop.xlane.xlu0 %163
    %v165 = vsel %vm36, %v164, 0.0
    %v166 = vrot.slane %v165, 4
    %v167 = vadd.f32 %v165, %v166
    %v168 = vrot.slane %v167, 2
    %v169 = vadd.f32 %v167, %v168
    %v170 = vrot.slane %v169, 1
    %v171 = vadd.f32 %v169, %v170
    %v172 = vmul.f32 %v31, %v70
    %v173 = vsel %vm32, %v172, 0.0
    %174 = vadd.xlane.f32.xlu0 %v173
    %v175 = vpop.xlane.xlu0 %174
    %v176 = vsel %vm36, %v175, 0.0
    %v177 = vrot.slane %v176, 4
    %v178 = vadd.f32 %v176, %v177
    %v179 = vrot.slane %v178, 2
    %v180 = vadd.f32 %v178, %v179
    %v181 = vrot.slane %v180, 1
    %v182 = vadd.f32 %v180, %v181
    %v183 = vmul.f32 %v31, %v83
    %v184 = vsel %vm32, %v183, 0.0
    %185 = vadd.xlane.f32.xlu0 %v184
    %v186 = vpop.xlane.xlu0 %185
    %v187 = vsel %vm36, %v186, 0.0
    %v188 = vrot.slane %v187, 4
    %v189 = vadd.f32 %v187, %v188
    %v190 = vrot.slane %v189, 2
    %v191 = vadd.f32 %v189, %v190
    %v192 = vrot.slane %v191, 1
    %v193 = vadd.f32 %v191, %v192
    %195 = vrot.lane.b32.xlu0 %v95, 127
    %v196 = vpop.permute.xlu0 %195
    %v198 = vsel %vm32, %v196, 0.0
    %199 = vadd.xlane.f32.xlu0 %v198
    %v200 = vpop.xlane.xlu0 %199
    %v201 = vsel %vm36, %v200, 0.0
    %v202 = vrot.slane %v201, 4
    %v203 = vadd.f32 %v201, %v202
    %v204 = vrot.slane %v203, 2
    %v205 = vadd.f32 %v203, %v204
    %v206 = vrot.slane %v205, 1
    %v207 = vadd.f32 %v205, %v206
    %209 = vrot.lane.b32.xlu0 %v106, 127
    %v210 = vpop.permute.xlu0 %209
    %v212 = vsel %vm32, %v210, 0.0
    %213 = vadd.xlane.f32.xlu0 %v212
    %v214 = vpop.xlane.xlu0 %213
    %v215 = vsel %vm36, %v214, 0.0
    %v216 = vrot.slane %v215, 4
    %v217 = vadd.f32 %v215, %v216
    %v218 = vrot.slane %v217, 2
    %v219 = vadd.f32 %v217, %v218
    %v220 = vrot.slane %v219, 1
    %v221 = vadd.f32 %v219, %v220
    %223 = vrot.lane.b32.xlu0 %v117, 127
    %v224 = vpop.permute.xlu0 %223
    %v226 = vsel %vm32, %v224, 0.0
    %227 = vadd.xlane.f32.xlu0 %v226
    %v228 = vpop.xlane.xlu0 %227
    %v229 = vsel %vm36, %v228, 0.0
    %v230 = vrot.slane %v229, 4
    %v231 = vadd.f32 %v229, %v230
    %v232 = vrot.slane %v231, 2
    %v233 = vadd.f32 %v231, %v232
    %v234 = vrot.slane %v233, 1
    %v235 = vadd.f32 %v233, %v234
    %237 = vrot.lane.b32.xlu0 %v150, 127
    %v238 = vpop.permute.xlu0 %237
    %v240 = vsel %vm32, %v238, 0.0
    %241 = vadd.xlane.f32.xlu0 %v240
    %v242 = vpop.xlane.xlu0 %241
    %v243 = vsel %vm36, %v242, 0.0
    %v244 = vrot.slane %v243, 4
    %v245 = vadd.f32 %v243, %v244
    %v246 = vrot.slane %v245, 2
    %v247 = vadd.f32 %v245, %v246
    %v248 = vrot.slane %v247, 1
    %v249 = vadd.f32 %v247, %v248
    %251 = vrot.lane.b32.xlu0 %v161, 127
    %v252 = vpop.permute.xlu0 %251
    %v254 = vsel %vm32, %v252, 0.0
    %255 = vadd.xlane.f32.xlu0 %v254
    %v256 = vpop.xlane.xlu0 %255
    %v257 = vsel %vm36, %v256, 0.0
    %v258 = vrot.slane %v257, 4
    %v259 = vadd.f32 %v257, %v258
    %v260 = vrot.slane %v259, 2
    %v261 = vadd.f32 %v259, %v260
    %v262 = vrot.slane %v261, 1
    %v263 = vadd.f32 %v261, %v262
    %264 = vrot.lane.b32.xlu0 %v95, 126
    %v265 = vpop.permute.xlu0 %264
    %v267 = vsel %vm32, %v265, 0.0
    %268 = vadd.xlane.f32.xlu0 %v267
    %v269 = vpop.xlane.xlu0 %268
    %v270 = vsel %vm36, %v269, 0.0
    %v271 = vrot.slane %v270, 4
    %v272 = vadd.f32 %v270, %v271
    %v273 = vrot.slane %v272, 2
    %v274 = vadd.f32 %v272, %v273
    %v275 = vrot.slane %v274, 1
    %v276 = vadd.f32 %v274, %v275
    %v277 = vld [vmem:[#allocation5] sm:$0x1]
    %vm278 = vcmask 7168
    %v279 = vsel %vm278, %v43, %v53
    %vm280 = vcmask 15360
    %v281 = vsel %vm280, %v279, %v67
    %vm282 = vcmask 23552
    %v283 = vsel %vm282, %v281, %v81
    %vm284 = vcmask 31744
    %v285 = vsel %vm284, %v283, %v94
    %vm286 = vcmask 39936
    %v287 = vsel %vm286, %v285, %v105
    %vm288 = vcmask 48128
    %v289 = vsel %vm288, %v287, %v116
    %vm290 = vcmask 56320
    %v291 = vsel %vm290, %v289, %v127
    %vm292 = vcmask 64512
    %v293 = vsel %vm292, %v291, %v138
    %vm294 = vcmask 72704
    %v295 = vsel %vm294, %v293, %v149
    %vm296 = vcmask 80896
    %v297 = vsel %vm296, %v295, %v116
    %vm298 = vcmask 89088
    %v299 = vsel %vm298, %v297, %v160
    %vm300 = vcmask 97280
    %v301 = vsel %vm300, %v299, %v171
    %vm302 = vcmask 105472
    %v303 = vsel %vm302, %v301, %v182
    %vm304 = vcmask 113664
    %v305 = vsel %vm304, %v303, %v193
    %vm306 = vcmask 121856
    %v307 = vsel %vm306, %v305, %v127
    %v308 = vsel %vm278, %v171, %v207
    %v309 = vsel %vm280, %v308, %v221
    %v310 = vsel %vm282, %v309, %v235
    %v311 = vsel %vm284, %v310, %v138
    %v312 = vsel %vm286, %v311, %v182
    %v313 = vsel %vm288, %v312, %v221
    %v314 = vsel %vm290, %v313, %v249
    %v315 = vsel %vm292, %v314, %v263
    %v316 = vsel %vm294, %v315, %v149
    %v317 = vsel %vm296, %v316, %v193
    %v318 = vsel %vm298, %v317, %v235
    %v319 = vsel %vm300, %v318, %v263
    %v320 = vsel %vm302, %v319, %v276
    %322 = vrot.lane.b32.xlu0 %v320, 16
    %v323 = vpop.permute.xlu0 %322
    %vm325 = vcmask 130048
    %v326 = vsel %vm325, %v307, %v323
    %v327 = vadd.f32 %v277, %v326
    %vm328 = vcmask 237568
    %329 = vst.msk [vmem:[#allocation5] sm:$0x1] %vm328, %v327
    // Predicated region
    $region14: #{tpu_custom_call.1} parent=1 // pred_check
      _
    $region15: #{tpu_custom_call.1} parent=1 // pred_check_branch
      %331 = sbr.rel (0) target = $region17
    $region16: #{tpu_custom_call.1} parent=1 // pred_region
      %s333 = ssub.s32 16, 16
      %334 = vsyncadd [#allocation4], %s333
      %s336 = sshll.u32 [#allocation5], 4
      %s337 = int_to_ptr.vmem [resolvable:$true] %s336
      %339 = dma.vmem_to_hbm [thread:$0]  %s337, 16, %s1, [#allocation4]
    $region17: #{tpu_custom_call.1} parent=1 // pred_fallthru
      _
    // Predicated region
    $region18: #{tpu_custom_call.1} parent=1 // pred_check
      _
    $region19: #{tpu_custom_call.1} parent=1 // pred_check_branch
      %341 = sbr.rel (0) target = $region21
    $region20: #{tpu_custom_call.1} parent=1 // pred_region
      %342 = dma.done [#allocation4], 16
    $region21: #{tpu_custom_call.1} parent=1 // pred_fallthru
      _
    %343 = vsyncpa [#allocation3], 1
    %344 = vsyncpa [#allocation4], 1

</llo_original>
